<compile_context>
chip_gen: v6e
topology: v6e:2x2x1
jax: 0.10.0
libtpu: 0.0.40
codegen_flags: <defaults>
</compile_context>

<pallas_src>
import jax
import jax.numpy as jnp
from jax.experimental import pallas as pl
from jax.experimental.pallas import tpu as pltpu


def _round_up(a: int, b: int) -> int:
    return (a + b - 1) // b * b


def _vmem_capacity_bytes() -> int:
    try:
        return int(pltpu.get_tpu_info().vmem_capacity_bytes)
    except Exception:
        return 64 << 20  # most conservative real-chip value (v7x per TensorCore)


def _choose_tm(n_rows: int) -> int:
    """Largest MXU-friendly row tile with small padding waste; keep >=2 row
    tiles when there is enough work so the parallel axis can shard across
    v7x's two TensorCores."""
    if n_rows <= 256:
        return _round_up(n_rows, 8)
    for tm in (1024, 512, 256, 128):
        n_pad = _round_up(n_rows, tm)
        waste_ok = (n_pad - n_rows) * 8 <= n_rows      # <= 12.5% dead rows
        two_steps = (n_pad // tm) >= 2                 # both v7x TCs busy
        if waste_ok and two_steps:
            return tm
    return 128


def _choose_tk(hidden: int, k_tile: int) -> int:
    """Largest divisor of `hidden` that is a multiple of 128 and <= k_tile."""
    if hidden <= k_tile:
        return hidden
    t = (min(k_tile, hidden) // 128) * 128
    while t >= 128:
        if hidden % t == 0:
            return t
        t -= 128
    return hidden  # last resort (still correct; block == full dim)


def _layernorm_store(y, g_ref, bt_ref, o_ref, eps=1e-5):
    # Single pass over y: mean and mean-of-squares; biased var (PyTorch default).
    mean = jnp.mean(y, axis=-1, keepdims=True)
    mean_sq = jnp.mean(y * y, axis=-1, keepdims=True)
    var = jnp.maximum(mean_sq - mean * mean, 0.0)
    y_norm = (y - mean) * jax.lax.rsqrt(var + eps)
    o_ref[...] = (y_norm * g_ref[...].astype(jnp.float32)
                  + bt_ref[...].astype(jnp.float32)).astype(o_ref.dtype)


# ----------------------- Variant A: resident weights -------------------------
def _ffn_resident_kernel(x_ref, w1_ref, b1_ref, w2_ref, b2_ref, g_ref, bt_ref,
                         o_ref):
    x = x_ref[...]                                        # (tm, d_model) f32
    h = jnp.dot(x.astype(w1_ref.dtype), w1_ref[...],
                preferred_element_type=jnp.float32)
    h = jnp.maximum(h + b1_ref[...].astype(jnp.float32), 0.0)
    y = jnp.dot(h.astype(w2_ref.dtype), w2_ref[...],
                preferred_element_type=jnp.float32)
    # Dropout: eval/inference identity. Residual + LayerNorm in f32.
    y = y + b2_ref[...].astype(jnp.float32) + x.astype(jnp.float32)
    _layernorm_store(y, g_ref, bt_ref, o_ref)


# ----------------------- Variant B: k-tiled reduction -------------------------
def _ffn_ktiled_kernel(x_ref, w1_ref, b1_ref, w2_ref, b2_ref, g_ref, bt_ref,
                       o_ref, acc_ref, xlp_ref):
    k = pl.program_id(1)

    @pl.when(k == 0)
    def _init():
        acc_ref[...] = jnp.zeros_like(acc_ref)
        # Hoisted cast: x -> matmul dtype once per row tile, reused for all k.
        xlp_ref[...] = x_ref[...].astype(xlp_ref.dtype)

    h = jnp.dot(xlp_ref[...], w1_ref[...], preferred_element_type=jnp.float32)
    h = jnp.maximum(h + b1_ref[...].astype(jnp.float32), 0.0)
    acc_ref[...] += jnp.dot(h.astype(w2_ref.dtype), w2_ref[...],
                            preferred_element_type=jnp.float32)

    @pl.when(k == pl.num_programs(1) - 1)
    def _finalize():
        # Dropout: eval/inference identity. Residual + LayerNorm in f32.
        y = acc_ref[...] + b2_ref[...].astype(jnp.float32) \
            + x_ref[...].astype(jnp.float32)
        _layernorm_store(y, g_ref, bt_ref, o_ref)


def position_wise_ffn(x, w1t, b1, w2t, b2, gamma, beta, *,
                      k_tile=512, force_ktiled=False):
    """FFN block forward.

    x    : (B, L, d_model)
    w1t  : (d_model, hidden)  -- W_1.weight pre-transposed (ideally bf16)
    b1   : (hidden,)
    w2t  : (hidden, d_model)  -- W_2.weight pre-transposed (ideally bf16)
    b2   : (d_model,)
    gamma, beta : (d_model,)  -- LayerNorm affine params
    """
    B, L, d_model = x.shape
    dm_w, hidden = w1t.shape
    assert dm_w == d_model and w2t.shape == (hidden, d_model)

    N = B * L
    xbytes = jnp.dtype(x.dtype).itemsize
    wbytes = jnp.dtype(w1t.dtype).itemsize

    # ---- explicit per-chip VMEM budget -------------------------------------
    capacity = _vmem_capacity_bytes()
    usable = max(32 << 20, capacity - (16 << 20))
    headroom = 8 << 20

    tm = _choose_tm(N)

    def io_block_bytes(tm_):
        # double-buffered x tile + out tile, plus (padded) bias/affine rows
        io = 4 * tm_ * d_model * xbytes
        small = 2 * 8 * (_round_up(hidden, 128) + 3 * _round_up(d_model, 128)) * 4
        return io + small

    resident_need = (io_block_bytes(tm)
                     + 2 * d_model * hidden * wbytes      # W1 (worst case 2 bufs)
                     + 2 * hidden * d_model * wbytes)     # W2 (worst case 2 bufs)
    use_resident = (not force_ktiled) and (resident_need + headroom <= usable)

    if use_resident:
        need = resident_need
        grid = None  # set below after padding
        kernel = _ffn_resident_kernel
        scratch = []
        dims = ("parallel",)
        tk = hidden
    else:
        tk = _choose_tk(hidden, k_tile)

        def ktiled_need(tm_):
            return (io_block_bytes(tm_)
                    + 2 * d_model * tk * wbytes + 2 * tk * d_model * wbytes
                    + tm_ * d_model * 4            # f32 accumulator
                    + tm_ * d_model * wbytes)      # low-precision x scratch

        while ktiled_need(tm) + headroom > usable and tm > 8:
            tm = max(8, _round_up(tm // 2, 8))
        need = ktiled_need(tm)
        kernel = _ffn_ktiled_kernel
        dims = ("parallel", "arbitrary")

    # ---- pad rows to the chosen tile ----------------------------------------
    n_pad = _round_up(N, tm)
    x2d = x.reshape(N, d_model)
    if n_pad != N:
        x2d = jnp.pad(x2d, ((0, n_pad - N), (0, 0)))
    num_row_tiles = n_pad // tm

    b1_2d = b1.reshape(1, hidden)
    b2_2d = b2.reshape(1, d_model)
    g_2d = gamma.reshape(1, d_model)
    beta_2d = beta.reshape(1, d_model)

    if use_resident:
        grid = (num_row_tiles,)
        in_specs = [
            pl.BlockSpec((tm, d_model), lambda i: (i, 0)),        # x tile
            pl.BlockSpec((d_model, hidden), lambda i: (0, 0)),    # W1^T (resident)
            pl.BlockSpec((1, hidden), lambda i: (0, 0)),          # b1
            pl.BlockSpec((hidden, d_model), lambda i: (0, 0)),    # W2^T (resident)
            pl.BlockSpec((1, d_model), lambda i: (0, 0)),         # b2
            pl.BlockSpec((1, d_model), lambda i: (0, 0)),         # gamma
            pl.BlockSpec((1, d_model), lambda i: (0, 0)),         # beta
        ]
        out_specs = pl.BlockSpec((tm, d_model), lambda i: (i, 0))
    else:
        grid = (num_row_tiles, hidden // tk)
        in_specs = [
            pl.BlockSpec((tm, d_model), lambda i, k: (i, 0)),     # x tile
            pl.BlockSpec((d_model, tk), lambda i, k: (0, k)),     # W1^T slab
            pl.BlockSpec((1, tk), lambda i, k: (0, k)),           # b1 slab
            pl.BlockSpec((tk, d_model), lambda i, k: (k, 0)),     # W2^T slab
            pl.BlockSpec((1, d_model), lambda i, k: (0, 0)),      # b2
            pl.BlockSpec((1, d_model), lambda i, k: (0, 0)),      # gamma
            pl.BlockSpec((1, d_model), lambda i, k: (0, 0)),      # beta
        ]
        out_specs = pl.BlockSpec((tm, d_model), lambda i, k: (i, 0))
        scratch = [pltpu.VMEM((tm, d_model), jnp.float32),        # accumulator
                   pltpu.VMEM((tm, d_model), w1t.dtype)]          # x in matmul dtype

    vmem_limit = int(min(usable, max(32 << 20, int(need * 1.25) + headroom)))

    weight_passes = 1 if use_resident else num_row_tiles
    cost = pl.CostEstimate(
        flops=4 * N * d_model * hidden,
        transcendentals=n_pad,  # one rsqrt per row
        bytes_accessed=(2 * n_pad * d_model * xbytes
                        + weight_passes * (w1t.size + w2t.size) * wbytes),
    )

    out2d = pl.pallas_call(
        kernel,
        out_shape=jax.ShapeDtypeStruct((n_pad, d_model), x.dtype),
        grid_spec=pltpu.PrefetchScalarGridSpec(
            num_scalar_prefetch=0,
            grid=grid,
            in_specs=in_specs,
            out_specs=out_specs,
            scratch_shapes=scratch,
        ),
        compiler_params=pltpu.CompilerParams(
            dimension_semantics=dims,
            vmem_limit_bytes=vmem_limit,
        ),
        cost_estimate=cost,
    )(x2d, w1t, b1_2d, w2t, b2_2d, g_2d, beta_2d)

    if n_pad != N:
        out2d = out2d[:N]
    return out2d.reshape(B, L, d_model)


def reference_ffn(x, w1t, b1, w2t, b2, gamma, beta):
    """Pure-JAX reference with the same matmul-dtype / f32-accumulate recipe."""
    B, L, d_model = x.shape
    x2 = x.reshape(-1, d_model)
    h = jnp.dot(x2.astype(w1t.dtype), w1t, preferred_element_type=jnp.float32) + b1
    h = jnp.maximum(h, 0.0)
    y = jnp.dot(h.astype(w2t.dtype), w2t, preferred_element_type=jnp.float32) + b2
    y = y + x2
    mean = jnp.mean(y, axis=-1, keepdims=True)
    var = jnp.mean((y - mean) ** 2, axis=-1, keepdims=True)
    out = (y - mean) / jnp.sqrt(var + 1e-5) * gamma + beta
    return out.reshape(B, L, d_model)


if __name__ == "__main__":
    # Small, lane-dense shapes (d_model multiple of 128 -> unmasked stores).
    B, L, d_model, hidden = 2, 8, 128, 256

    key = jax.random.PRNGKey(0)
    kx, k1, kb1, k2, kb2 = jax.random.split(key, 5)

    x = jax.random.normal(kx, (B, L, d_model), dtype=jnp.float32)

    # Parameters in PyTorch nn.Linear / nn.LayerNorm layout.
    w1 = jax.random.normal(k1, (hidden, d_model), dtype=jnp.float32) * 0.1
    b1 = jax.random.normal(kb1, (hidden,), dtype=jnp.float32) * 0.1
    w2 = jax.random.normal(k2, (d_model, hidden), dtype=jnp.float32) * 0.1
    b2 = jax.random.normal(kb2, (d_model,), dtype=jnp.float32) * 0.1
    gamma = jnp.ones((d_model,), dtype=jnp.float32)
    beta = jnp.zeros((d_model,), dtype=jnp.float32)

    # One-time parameter prep OUTSIDE the per-call path: transpose to
    # matmul-friendly layout and cast MXU operands to bf16.
    w1t = w1.T.astype(jnp.bfloat16)     # (d_model, hidden)
    w2t = w2.T.astype(jnp.bfloat16)     # (hidden, d_model)

    ref = reference_ffn(x, w1t, b1, w2t, b2, gamma, beta)

    # Variant A (resident weights) -- the default at these sizes.
    out = position_wise_ffn(x, w1t, b1, w2t, b2, gamma, beta)
    out = jax.block_until_ready(out)
    assert out.shape == (B, L, d_model)
    err_a = float(jnp.max(jnp.abs(out - ref)))
    assert jnp.allclose(out, ref, atol=2e-2, rtol=2e-2), err_a

    # Variant B (k-tiled reduction) -- exercised here to keep both paths tested.
    out_k = position_wise_ffn(x, w1t, b1, w2t, b2, gamma, beta,
                              k_tile=128, force_ktiled=True)
    out_k = jax.block_until_ready(out_k)
    err_b = float(jnp.max(jnp.abs(out_k - ref)))
    assert jnp.allclose(out_k, ref, atol=2e-2, rtol=2e-2), err_b

    print("KERNEL_OK")
</pallas_src>

<mosaic_0001>
module attributes {stable_mosaic.version = 11 : i64} {
  func.func @_ffn_resident_kernel(%arg0: i32, %arg1: memref<16x128xf32, #tpu.memory_space<vmem>>, %arg2: memref<128x256xbf16, #tpu.memory_space<vmem>>, %arg3: memref<1x256xf32, #tpu.memory_space<vmem>>, %arg4: memref<256x128xbf16, #tpu.memory_space<vmem>>, %arg5: memref<1x128xf32, #tpu.memory_space<vmem>>, %arg6: memref<1x128xf32, #tpu.memory_space<vmem>>, %arg7: memref<1x128xf32, #tpu.memory_space<vmem>>, %arg8: memref<16x128xf32, #tpu.memory_space<vmem>>) attributes {dimension_semantics = [#tpu.dimension_semantics<parallel>], iteration_bounds = array<i64: 1>, scalar_prefetch = 0 : i64, scratch_operands = 0 : i64, tpu.core_type = #tpu.core_type<tc>, window_params = [{transform_indices = @transform_0, window_bounds = array<i64: 16, 128>}, {pipeline_mode = #tpu.pipeline_mode<synchronous>, transform_indices = @transform_1, window_bounds = array<i64: 128, 256>}, {pipeline_mode = #tpu.pipeline_mode<synchronous>, transform_indices = @transform_2, window_bounds = array<i64: 1, 256>}, {pipeline_mode = #tpu.pipeline_mode<synchronous>, transform_indices = @transform_3, window_bounds = array<i64: 256, 128>}, {pipeline_mode = #tpu.pipeline_mode<synchronous>, transform_indices = @transform_4, window_bounds = array<i64: 1, 128>}, {pipeline_mode = #tpu.pipeline_mode<synchronous>, transform_indices = @transform_5, window_bounds = array<i64: 1, 128>}, {pipeline_mode = #tpu.pipeline_mode<synchronous>, transform_indices = @transform_6, window_bounds = array<i64: 1, 128>}, {transform_indices = @transform_7, window_bounds = array<i64: 16, 128>}]} {
    %c0 = arith.constant 0 : index
    %c0_0 = arith.constant 0 : index
    %0 = vector.load %arg1[%c0, %c0_0] : memref<16x128xf32, #tpu.memory_space<vmem>>, vector<16x128xf32>
    %1 = arith.truncf %0 : vector<16x128xf32> to vector<16x128xbf16>
    %c0_1 = arith.constant 0 : index
    %c0_2 = arith.constant 0 : index
    %2 = vector.load %arg2[%c0_1, %c0_2] : memref<128x256xbf16, #tpu.memory_space<vmem>>, vector<128x256xbf16>
    %cst = arith.constant dense<0.000000e+00> : vector<16x256xf32>
    %3 = tpu.matmul %1, %2, %cst {dimension_numbers = #tpu.dot_dimension_numbers<[1], [0], [0], [1], [0, 0, 1, 1], [], []>} : vector<16x128xbf16>, vector<128x256xbf16>, vector<16x256xf32> -> vector<16x256xf32>
    %c0_3 = arith.constant 0 : index
    %c0_4 = arith.constant 0 : index
    %4 = vector.load %arg3[%c0_3, %c0_4] : memref<1x256xf32, #tpu.memory_space<vmem>>, vector<1x256xf32>
    %5 = vector.broadcast %4 : vector<1x256xf32> to vector<16x256xf32>
    %6 = arith.addf %3, %5 : vector<16x256xf32>
    %cst_5 = arith.constant 0.000000e+00 : f32
    %7 = vector.broadcast %cst_5 : f32 to vector<16x256xf32>
    %8 = arith.maximumf %6, %7 : vector<16x256xf32>
    %9 = arith.truncf %8 : vector<16x256xf32> to vector<16x256xbf16>
    %c0_6 = arith.constant 0 : index
    %c0_7 = arith.constant 0 : index
    %10 = vector.load %arg4[%c0_6, %c0_7] : memref<256x128xbf16, #tpu.memory_space<vmem>>, vector<256x128xbf16>
    %cst_8 = arith.constant dense<0.000000e+00> : vector<16x128xf32>
    %11 = tpu.matmul %9, %10, %cst_8 {dimension_numbers = #tpu.dot_dimension_numbers<[1], [0], [0], [1], [0, 0, 1, 1], [], []>} : vector<16x256xbf16>, vector<256x128xbf16>, vector<16x128xf32> -> vector<16x128xf32>
    %c0_9 = arith.constant 0 : index
    %c0_10 = arith.constant 0 : index
    %12 = vector.load %arg5[%c0_9, %c0_10] : memref<1x128xf32, #tpu.memory_space<vmem>>, vector<1x128xf32>
    %13 = vector.broadcast %12 : vector<1x128xf32> to vector<16x128xf32>
    %14 = arith.addf %11, %13 : vector<16x128xf32>
    %15 = arith.addf %14, %0 : vector<16x128xf32>
    %cst_11 = arith.constant dense<0.000000e+00> : vector<16xf32>
    %16 = vector.multi_reduction <add>, %15, %cst_11 [1] : vector<16x128xf32> to vector<16xf32>
    %17 = vector.shape_cast %16 : vector<16xf32> to vector<16x1xf32>
    %cst_12 = arith.constant 1.280000e+02 : f32
    %18 = vector.broadcast %cst_12 : f32 to vector<16x1xf32>
    %19 = arith.divf %17, %18 : vector<16x1xf32>
    %20 = arith.mulf %15, %15 : vector<16x128xf32>
    %cst_13 = arith.constant dense<0.000000e+00> : vector<16xf32>
    %21 = vector.multi_reduction <add>, %20, %cst_13 [1] : vector<16x128xf32> to vector<16xf32>
    %22 = vector.shape_cast %21 : vector<16xf32> to vector<16x1xf32>
    %cst_14 = arith.constant 1.280000e+02 : f32
    %23 = vector.broadcast %cst_14 : f32 to vector<16x1xf32>
    %24 = arith.divf %22, %23 : vector<16x1xf32>
    %25 = arith.mulf %19, %19 : vector<16x1xf32>
    %26 = arith.subf %24, %25 : vector<16x1xf32>
    %cst_15 = arith.constant 0.000000e+00 : f32
    %27 = vector.broadcast %cst_15 : f32 to vector<16x1xf32>
    %28 = arith.maximumf %26, %27 : vector<16x1xf32>
    %29 = vector.broadcast %19 : vector<16x1xf32> to vector<16x128xf32>
    %30 = arith.subf %15, %29 : vector<16x128xf32>
    %cst_16 = arith.constant 9.99999974E-6 : f32
    %31 = vector.broadcast %cst_16 : f32 to vector<16x1xf32>
    %32 = arith.addf %28, %31 : vector<16x1xf32>
    %33 = math.rsqrt %32 : vector<16x1xf32>
    %34 = vector.broadcast %33 : vector<16x1xf32> to vector<16x128xf32>
    %35 = arith.mulf %30, %34 : vector<16x128xf32>
    %c0_17 = arith.constant 0 : index
    %c0_18 = arith.constant 0 : index
    %36 = vector.load %arg6[%c0_17, %c0_18] : memref<1x128xf32, #tpu.memory_space<vmem>>, vector<1x128xf32>
    %37 = vector.broadcast %36 : vector<1x128xf32> to vector<16x128xf32>
    %38 = arith.mulf %35, %37 : vector<16x128xf32>
    %c0_19 = arith.constant 0 : index
    %c0_20 = arith.constant 0 : index
    %39 = vector.load %arg7[%c0_19, %c0_20] : memref<1x128xf32, #tpu.memory_space<vmem>>, vector<1x128xf32>
    %40 = vector.broadcast %39 : vector<1x128xf32> to vector<16x128xf32>
    %41 = arith.addf %38, %40 : vector<16x128xf32>
    %c0_21 = arith.constant 0 : index
    %c0_22 = arith.constant 0 : index
    %42 = vector.load %arg8[%c0_21, %c0_22] : memref<16x128xf32, #tpu.memory_space<vmem>>, vector<16x128xf32>
    tpu.vector_store %arg8[%c0_21, %c0_22], %41 {strides = array<i32>} : memref<16x128xf32, #tpu.memory_space<vmem>>, vector<16x128xf32>,
    return
  }
  func.func @transform_0(%arg0: i32) -> (i32, i32) {
    %c0_i32 = arith.constant 0 : i32
    %c0_i32_0 = arith.constant 0 : i32
    return %arg0, %c0_i32 : i32, i32
  }
  func.func @transform_1(%arg0: i32) -> (i32, i32) {
    %c0_i32 = arith.constant 0 : i32
    %c0_i32_0 = arith.constant 0 : i32
    %c0_i32_1 = arith.constant 0 : i32
    return %c0_i32, %c0_i32_0 : i32, i32
  }
  func.func @transform_2(%arg0: i32) -> (i32, i32) {
    %c0_i32 = arith.constant 0 : i32
    %c0_i32_0 = arith.constant 0 : i32
    %c0_i32_1 = arith.constant 0 : i32
    return %c0_i32, %c0_i32_0 : i32, i32
  }
  func.func @transform_3(%arg0: i32) -> (i32, i32) {
    %c0_i32 = arith.constant 0 : i32
    %c0_i32_0 = arith.constant 0 : i32
    %c0_i32_1 = arith.constant 0 : i32
    return %c0_i32, %c0_i32_0 : i32, i32
  }
  func.func @transform_4(%arg0: i32) -> (i32, i32) {
    %c0_i32 = arith.constant 0 : i32
    %c0_i32_0 = arith.constant 0 : i32
    %c0_i32_1 = arith.constant 0 : i32
    return %c0_i32, %c0_i32_0 : i32, i32
  }
  func.func @transform_5(%arg0: i32) -> (i32, i32) {
    %c0_i32 = arith.constant 0 : i32
    %c0_i32_0 = arith.constant 0 : i32
    %c0_i32_1 = arith.constant 0 : i32
    return %c0_i32, %c0_i32_0 : i32, i32
  }
  func.func @transform_6(%arg0: i32) -> (i32, i32) {
    %c0_i32 = arith.constant 0 : i32
    %c0_i32_0 = arith.constant 0 : i32
    %c0_i32_1 = arith.constant 0 : i32
    return %c0_i32, %c0_i32_0 : i32, i32
  }
  func.func @transform_7(%arg0: i32) -> (i32, i32) {
    %c0_i32 = arith.constant 0 : i32
    %c0_i32_0 = arith.constant 0 : i32
    return %arg0, %c0_i32 : i32, i32
  }
}

</mosaic_0001>

<llo_original>
// kernel: tpu_custom_call.1
$region0: #{tpu_custom_call.1}
  #allocation0 [shape = 'u32[]', space=smem, size = 0x4, offset = 0x4, fixed_abs, tag = 'smem constant byte address 0x4 - core index']
  #allocation1 [shape = 'u32[144,128]{1,0:T(1,128)}', space=vmem, size = 0x12000, scoped, tag = 'internal scratch']
  %s0 = inlined_call_operand.hbm [shape: f32[16,128], index: 0, kind: input, shape index: {}]
  %s1 = inlined_call_operand.hbm [shape: bf16[128,256], index: 1, kind: input, shape index: {}]
  %s2 = inlined_call_operand.vmem [shape: f32[1,256], index: 2, kind: input, shape index: {}]
  %s3 = inlined_call_operand.hbm [shape: bf16[256,128], index: 3, kind: input, shape index: {}]
  %s4 = inlined_call_operand.vmem [shape: f32[1,128], index: 4, kind: input, shape index: {}]
  %s5 = inlined_call_operand.vmem [shape: f32[1,128], index: 5, kind: input, shape index: {}]
  %s6 = inlined_call_operand.vmem [shape: f32[1,128], index: 6, kind: input, shape index: {}]
  %s7 = inlined_call_operand.hbm [shape: f32[16,128], index: 7, kind: output, shape index: {}]
  %s8 = sld [smem:[#allocation0]]
  $region50: #{tpu_custom_call.1} parent=0
    _
  %s10 = ssub.s32 1, %s8
  %s11 = scalar_select 0, %s10, %s8
  $region1: #{tpu_custom_call.1} parent=0
    #allocation2 [shape = 'u8[8192]{0}', space=vmem, size = 0x2000, scoped, tag = 'input window, operand 0, single buffered']
    #allocation3 [shape = 's32[1]{0}', space=sflag, size = 0x4, scoped, tag = 'scoped memory for tpu_custom_call.1']
    #allocation4 [shape = 's32[1]{0}', space=sflag, size = 0x4, scoped, tag = 'scoped memory for tpu_custom_call.1']
    #allocation5 [shape = 'u8[65536]{0}', space=vmem, size = 0x10000, scoped, tag = 'input window, operand 1, single buffered']
    #allocation6 [shape = 's32[1]{0}', space=sflag, size = 0x4, scoped, tag = 'scoped memory for tpu_custom_call.1']
    #allocation7 [shape = 'u8[65536]{0}', space=vmem, size = 0x10000, scoped, tag = 'input window, operand 3, single buffered']
    #allocation8 [shape = 'u8[8192]{0}', space=vmem, size = 0x2000, scoped, tag = 'output window, operand 0, single buffered']
    %12 = vsyncpa [#allocation3], 0
    %13 = vsyncpa [#allocation6], 0
    %14 = vsyncpa [#allocation4], 0
    // Predicated region
    $region2: #{tpu_custom_call.1} parent=1 // pred_check
      _
    $region3: #{tpu_custom_call.1} parent=1 // pred_check_branch
      %16 = sbr.rel (0) target = $region5
    $region4: #{tpu_custom_call.1} parent=1 // pred_region
      %s18 = ssub.s32 256, 256
      %19 = vsyncadd [#allocation3], %s18
      %s20 = sshll.u32 [#allocation2], 4
      %s21 = int_to_ptr.vmem [resolvable:$true] %s20
      %26 = dma.hbm_to_vmem [thread:$0]  %s0, 256, %s21, [#allocation3], 128, 128, 8
    $region5: #{tpu_custom_call.1} parent=1 // pred_fallthru
      _
    // Predicated region
    $region6: #{tpu_custom_call.1} parent=1 // pred_check
      _
    $region7: #{tpu_custom_call.1} parent=1 // pred_check_branch
      %28 = sbr.rel (0) target = $region9
    $region8: #{tpu_custom_call.1} parent=1 // pred_region
      %s30 = ssub.s32 2048, 2048
      %31 = vsyncadd [#allocation6], %s30
      %s32 = sshll.u32 [#allocation5], 4
      %s33 = int_to_ptr.vmem [resolvable:$true] %s32
      %38 = dma.hbm_to_vmem [thread:$0]  %s1, 2048, %s33, [#allocation6], 128, 128, 8
    $region9: #{tpu_custom_call.1} parent=1 // pred_fallthru
      _
    // Predicated region
    $region10: #{tpu_custom_call.1} parent=1 // pred_check
      _
    $region11: #{tpu_custom_call.1} parent=1 // pred_check_branch
      %40 = sbr.rel (0) target = $region13
    $region12: #{tpu_custom_call.1} parent=1 // pred_region
      _
    $region13: #{tpu_custom_call.1} parent=1 // pred_fallthru
      _
    // Predicated region
    $region14: #{tpu_custom_call.1} parent=1 // pred_check
      _
    $region15: #{tpu_custom_call.1} parent=1 // pred_check_branch
      %42 = sbr.rel (0) target = $region17
    $region16: #{tpu_custom_call.1} parent=1 // pred_region
      %s44 = ssub.s32 2048, 2048
      %45 = vsyncadd [#allocation6], %s44
      %s46 = sshll.u32 [#allocation7], 4
      %s47 = int_to_ptr.vmem [resolvable:$true] %s46
      %52 = dma.hbm_to_vmem [thread:$0]  %s3, 2048, %s47, [#allocation6], 64, 64, 4
    $region17: #{tpu_custom_call.1} parent=1 // pred_fallthru
      _
    // Predicated region
    $region18: #{tpu_custom_call.1} parent=1 // pred_check
      _
    $region19: #{tpu_custom_call.1} parent=1 // pred_check_branch
      %54 = sbr.rel (0) target = $region21
    $region20: #{tpu_custom_call.1} parent=1 // pred_region
      _
    $region21: #{tpu_custom_call.1} parent=1 // pred_fallthru
      _
    // Predicated region
    $region22: #{tpu_custom_call.1} parent=1 // pred_check
      _
    $region23: #{tpu_custom_call.1} parent=1 // pred_check_branch
      %56 = sbr.rel (0) target = $region25
    $region24: #{tpu_custom_call.1} parent=1 // pred_region
      _
    $region25: #{tpu_custom_call.1} parent=1 // pred_fallthru
      _
    // Predicated region
    $region26: #{tpu_custom_call.1} parent=1 // pred_check
      _
    $region27: #{tpu_custom_call.1} parent=1 // pred_check_branch
      %58 = sbr.rel (0) target = $region29
    $region28: #{tpu_custom_call.1} parent=1 // pred_region
      _
    $region29: #{tpu_custom_call.1} parent=1 // pred_fallthru
      _
    // Predicated region
    $region30: #{tpu_custom_call.1} parent=1 // pred_check
      _
    $region31: #{tpu_custom_call.1} parent=1 // pred_check_branch
      %60 = sbr.rel (0) target = $region33
    $region32: #{tpu_custom_call.1} parent=1 // pred_region
      %61 = dma.done [#allocation3], 256
    $region33: #{tpu_custom_call.1} parent=1 // pred_fallthru
      _
    // Predicated region
    $region34: #{tpu_custom_call.1} parent=1 // pred_check
      _
    $region35: #{tpu_custom_call.1} parent=1 // pred_check_branch
      %63 = sbr.rel (0) target = $region37
    $region36: #{tpu_custom_call.1} parent=1 // pred_region
      %64 = dma.done [#allocation6], 2048
    $region37: #{tpu_custom_call.1} parent=1 // pred_fallthru
      _
    // Predicated region
    $region38: #{tpu_custom_call.1} parent=1 // pred_check
      _
    $region39: #{tpu_custom_call.1} parent=1 // pred_check_branch
      %66 = sbr.rel (0) target = $region41
    $region40: #{tpu_custom_call.1} parent=1 // pred_region
      %67 = dma.done [#allocation6], 2048
    $region41: #{tpu_custom_call.1} parent=1 // pred_fallthru
      _
    %v69 = vld [vmem:[#allocation2] sm:$0xff]
    %v70 = vld [vmem:[#allocation2 + $0x8] sm:$0xff]
    %v71 = vpack.c.bf16 %v70, %v69
    %v72 = vld [vmem:[#allocation5] sm:$0xff]
    %v73 = vld [vmem:[#allocation5 + $0x8] sm:$0xff]
    %v74 = vld [vmem:[#allocation5 + $0x10] sm:$0xff]
    %v75 = vld [vmem:[#allocation5 + $0x18] sm:$0xff]
    %v76 = vld [vmem:[#allocation5 + $0x20] sm:$0xff]
    %v77 = vld [vmem:[#allocation5 + $0x28] sm:$0xff]
    %v78 = vld [vmem:[#allocation5 + $0x30] sm:$0xff]
    %v79 = vld [vmem:[#allocation5 + $0x38] sm:$0xff]
    %v80 = vld [vmem:[#allocation5 + $0x40] sm:$0xff]
    %v81 = vld [vmem:[#allocation5 + $0x48] sm:$0xff]
    %v82 = vld [vmem:[#allocation5 + $0x50] sm:$0xff]
    %v83 = vld [vmem:[#allocation5 + $0x58] sm:$0xff]
    %v84 = vld [vmem:[#allocation5 + $0x60] sm:$0xff]
    %v85 = vld [vmem:[#allocation5 + $0x68] sm:$0xff]
    %v86 = vld [vmem:[#allocation5 + $0x70] sm:$0xff]
    %v87 = vld [vmem:[#allocation5 + $0x78] sm:$0xff]
    %v88 = vld [vmem:[%s2] sm:$0x3]
    %v90 = vlaneseq
    %v91 = vshrl.u32 %v90, 7
    %v92 = vsub.s32 0, %v91
    %v93 = vrot.slane %v88, %v92
    %v94 = vlaneseq
    %v95 = vshrl.u32 %v94, 7
    %v96 = vsub.s32 1, %v95
    %v97 = vrot.slane %v88, %v96
    %v116 = vunpack.c.l.b16 %v72
    %v117 = vunpack.c.h.b16 %v72
    %v118 = vunpack.c.l.b16 %v73
    %v119 = vunpack.c.h.b16 %v73
    %v120 = vunpack.c.l.b16 %v74
    %v121 = vunpack.c.h.b16 %v74
    %v122 = vunpack.c.l.b16 %v75
    %v123 = vunpack.c.h.b16 %v75
    %v124 = vunpack.c.l.b16 %v76
    %v125 = vunpack.c.h.b16 %v76
    %v126 = vunpack.c.l.b16 %v77
    %v127 = vunpack.c.h.b16 %v77
    %v128 = vunpack.c.l.b16 %v78
    %v129 = vunpack.c.h.b16 %v78
    %v130 = vunpack.c.l.b16 %v79
    %v131 = vunpack.c.h.b16 %v79
    %v132 = vunpack.c.l.b16 %v80
    %v133 = vunpack.c.h.b16 %v80
    %v134 = vunpack.c.l.b16 %v81
    %v135 = vunpack.c.h.b16 %v81
    %v136 = vunpack.c.l.b16 %v82
    %v137 = vunpack.c.h.b16 %v82
    %v138 = vunpack.c.l.b16 %v83
    %v139 = vunpack.c.h.b16 %v83
    %v140 = vunpack.c.l.b16 %v84
    %v141 = vunpack.c.h.b16 %v84
    %v142 = vunpack.c.l.b16 %v85
    %v143 = vunpack.c.h.b16 %v85
    %v144 = vunpack.c.l.b16 %v86
    %v145 = vunpack.c.h.b16 %v86
    %v146 = vunpack.c.l.b16 %v87
    %v147 = vunpack.c.h.b16 %v87
    %v148 = vpack.c.b16 %v118, %v116
    %v149 = vpack.c.b16 %v119, %v117
    %v150 = vpack.c.b16 %v122, %v120
    %v151 = vpack.c.b16 %v123, %v121
    %v152 = vpack.c.b16 %v126, %v124
    %v153 = vpack.c.b16 %v127, %v125
    %v154 = vpack.c.b16 %v130, %v128
    %v155 = vpack.c.b16 %v131, %v129
    %v156 = vpack.c.b16 %v134, %v132
    %v157 = vpack.c.b16 %v135, %v133
    %v158 = vpack.c.b16 %v138, %v136
    %v159 = vpack.c.b16 %v139, %v137
    %v160 = vpack.c.b16 %v142, %v140
    %v161 = vpack.c.b16 %v143, %v141
    %v162 = vpack.c.b16 %v146, %v144
    %v163 = vpack.c.b16 %v147, %v145
    %180 = vmatprep.subr.bf16.mxu0 %v163
    %181 = vmatpush1.bf16.msra.mxu0 %v162
    %182 = vmatprep.subr.bf16.mxu0 %v161
    %183 = vmatpush1.bf16.msra.mxu0 %v160
    %184 = vmatprep.subr.bf16.mxu0 %v159
    %185 = vmatpush1.bf16.msra.mxu0 %v158
    %186 = vmatprep.subr.bf16.mxu0 %v157
    %187 = vmatpush1.bf16.msra.mxu0 %v156
    %188 = vmatprep.subr.bf16.mxu0 %v155
    %189 = vmatpush1.bf16.msra.mxu0 %v154
    %190 = vmatprep.subr.bf16.mxu0 %v153
    %191 = vmatpush1.bf16.msra.mxu0 %v152
    %192 = vmatprep.subr.bf16.mxu0 %v151
    %193 = vmatpush1.bf16.msra.mxu0 %v150
    %194 = vmatprep.subr.bf16.mxu0 %v149
    %195 = vmatpush1.bf16.msra.mxu0 %v148
    %196 = vmatprep.subr.bf16.mxu0 0
    %197 = vmatpush2.bf16.msra.mxu0 0
    %198 = vmatprep.subr.bf16.mxu0 0
    %199 = vmatpush2.bf16.msra.mxu0 0
    %200 = vmatprep.subr.bf16.mxu0 0
    %201 = vmatpush2.bf16.msra.mxu0 0
    %202 = vmatprep.subr.bf16.mxu0 0
    %203 = vmatpush2.bf16.msra.mxu0 0
    %204 = vmatprep.subr.bf16.mxu0 0
    %205 = vmatpush2.bf16.msra.mxu0 0
    %206 = vmatprep.subr.bf16.mxu0 0
    %207 = vmatpush2.bf16.msra.mxu0 0
    %208 = vmatprep.subr.bf16.mxu0 0
    %209 = vmatpush2.bf16.msra.mxu0 0
    %210 = vmatprep.subr.bf16.mxu0 0
    %211 = vmatpush2.bf16.msra.mxu0 0
    %212 = vmatprep.mubr.bf16.mxu0 0
    %213 = vmatmul.mubr.bf16.gmra.mxu0 %v71
    %v214 = vpop.f32.mrf.mxu0
    %v215 = vadd.f32 %v93, %v214
    %v216 = vpop.f32.mrf.mxu0
    %v217 = vadd.f32 %v97, %v216
    %v218 = vpop.f32.mrf.mxu0
    %v219 = vadd.f32 %v93, %v218
    %v220 = vpop.f32.mrf.mxu0
    %v221 = vadd.f32 %v97, %v220
    %222 = vdwg.mxu0
    %v223 = vmax.f32 %v215, 0.0
    %v224 = vmax.f32 %v217, 0.0
    %v225 = vmax.f32 %v219, 0.0
    %v226 = vmax.f32 %v221, 0.0
    %v227 = vpack.c.bf16 %v225, %v223
    %v228 = vpack.c.bf16 %v226, %v224
    %v229 = vld [vmem:[#allocation7] sm:$0xf]
    %v230 = vld [vmem:[#allocation7 + $0x4] sm:$0xf]
    %v231 = vld [vmem:[#allocation7 + $0x8] sm:$0xf]
    %v232 = vld [vmem:[#allocation7 + $0xc] sm:$0xf]
    %v233 = vld [vmem:[#allocation7 + $0x10] sm:$0xf]
    %v234 = vld [vmem:[#allocation7 + $0x14] sm:$0xf]
    %v235 = vld [vmem:[#allocation7 + $0x18] sm:$0xf]
    %v236 = vld [vmem:[#allocation7 + $0x1c] sm:$0xf]
    %v237 = vld [vmem:[#allocation7 + $0x20] sm:$0xf]
    %v238 = vld [vmem:[#allocation7 + $0x24] sm:$0xf]
    %v239 = vld [vmem:[#allocation7 + $0x28] sm:$0xf]
    %v240 = vld [vmem:[#allocation7 + $0x2c] sm:$0xf]
    %v241 = vld [vmem:[#allocation7 + $0x30] sm:$0xf]
    %v242 = vld [vmem:[#allocation7 + $0x34] sm:$0xf]
    %v243 = vld [vmem:[#allocation7 + $0x38] sm:$0xf]
    %v244 = vld [vmem:[#allocation7 + $0x3c] sm:$0xf]
    %v245 = vld [vmem:[#allocation7 + $0x40] sm:$0xf]
    %v246 = vld [vmem:[#allocation7 + $0x44] sm:$0xf]
    %v247 = vld [vmem:[#allocation7 + $0x48] sm:$0xf]
    %v248 = vld [vmem:[#allocation7 + $0x4c] sm:$0xf]
    %v249 = vld [vmem:[#allocation7 + $0x50] sm:$0xf]
    %v250 = vld [vmem:[#allocation7 + $0x54] sm:$0xf]
    %v251 = vld [vmem:[#allocation7 + $0x58] sm:$0xf]
    %v252 = vld [vmem:[#allocation7 + $0x5c] sm:$0xf]
    %v253 = vld [vmem:[#allocation7 + $0x60] sm:$0xf]
    %v254 = vld [vmem:[#allocation7 + $0x64] sm:$0xf]
    %v255 = vld [vmem:[#allocation7 + $0x68] sm:$0xf]
    %v256 = vld [vmem:[#allocation7 + $0x6c] sm:$0xf]
    %v257 = vld [vmem:[#allocation7 + $0x70] sm:$0xf]
    %v258 = vld [vmem:[#allocation7 + $0x74] sm:$0xf]
    %v259 = vld [vmem:[#allocation7 + $0x78] sm:$0xf]
    %v260 = vld [vmem:[#allocation7 + $0x7c] sm:$0xf]
    %v261 = vld [vmem:[%s4] sm:$0x1]
    %v263 = vlaneseq
    %v264 = vshrl.u32 %v263, 7
    %v265 = vsub.s32 0, %v264
    %v266 = vrot.slane %v261, %v265
    %v300 = vunpack.c.l.b16 %v229
    %v301 = vunpack.c.l.b16 %v230
    %v302 = vunpack.c.l.b16 %v231
    %v303 = vunpack.c.l.b16 %v232
    %v304 = vunpack.c.l.b16 %v233
    %v305 = vunpack.c.l.b16 %v234
    %v306 = vunpack.c.l.b16 %v235
    %v307 = vunpack.c.l.b16 %v236
    %v308 = vunpack.c.l.b16 %v237
    %v309 = vunpack.c.l.b16 %v238
    %v310 = vunpack.c.l.b16 %v239
    %v311 = vunpack.c.l.b16 %v240
    %v312 = vunpack.c.l.b16 %v241
    %v313 = vunpack.c.l.b16 %v242
    %v314 = vunpack.c.l.b16 %v243
    %v315 = vunpack.c.l.b16 %v244
    %v316 = vunpack.c.l.b16 %v245
    %v317 = vunpack.c.l.b16 %v246
    %v318 = vunpack.c.l.b16 %v247
    %v319 = vunpack.c.l.b16 %v248
    %v320 = vunpack.c.l.b16 %v249
    %v321 = vunpack.c.l.b16 %v250
    %v322 = vunpack.c.l.b16 %v251
    %v323 = vunpack.c.l.b16 %v252
    %v324 = vunpack.c.l.b16 %v253
    %v325 = vunpack.c.l.b16 %v254
    %v326 = vunpack.c.l.b16 %v255
    %v327 = vunpack.c.l.b16 %v256
    %v328 = vunpack.c.l.b16 %v257
    %v329 = vunpack.c.l.b16 %v258
    %v330 = vunpack.c.l.b16 %v259
    %v331 = vunpack.c.l.b16 %v260
    %v332 = vpack.c.b16 %v301, %v300
    %v333 = vpack.c.b16 %v303, %v302
    %v334 = vpack.c.b16 %v305, %v304
    %v335 = vpack.c.b16 %v307, %v306
    %v336 = vpack.c.b16 %v309, %v308
    %v337 = vpack.c.b16 %v311, %v310
    %v338 = vpack.c.b16 %v313, %v312
    %v339 = vpack.c.b16 %v315, %v314
    %v340 = vpack.c.b16 %v317, %v316
    %v341 = vpack.c.b16 %v319, %v318
    %v342 = vpack.c.b16 %v321, %v320
    %v343 = vpack.c.b16 %v323, %v322
    %v344 = vpack.c.b16 %v325, %v324
    %v345 = vpack.c.b16 %v327, %v326
    %v346 = vpack.c.b16 %v329, %v328
    %v347 = vpack.c.b16 %v331, %v330
    %364 = vmatprep.subr.bf16.mxu0 0
    %365 = vmatpush1.bf16.msra.mxu0 %v339
    %366 = vmatprep.subr.bf16.mxu0 0
    %367 = vmatpush1.bf16.msra.mxu0 %v338
    %368 = vmatprep.subr.bf16.mxu0 0
    %369 = vmatpush1.bf16.msra.mxu0 %v337
    %370 = vmatprep.subr.bf16.mxu0 0
    %371 = vmatpush1.bf16.msra.mxu0 %v336
    %372 = vmatprep.subr.bf16.mxu0 0
    %373 = vmatpush1.bf16.msra.mxu0 %v335
    %374 = vmatprep.subr.bf16.mxu0 0
    %375 = vmatpush1.bf16.msra.mxu0 %v334
    %376 = vmatprep.subr.bf16.mxu0 0
    %377 = vmatpush1.bf16.msra.mxu0 %v333
    %378 = vmatprep.subr.bf16.mxu0 0
    %379 = vmatpush1.bf16.msra.mxu0 %v332
    %380 = vmatprep.subr.bf16.mxu0 0
    %381 = vmatpush2.bf16.msra.mxu0 %v347
    %382 = vmatprep.subr.bf16.mxu0 0
    %383 = vmatpush2.bf16.msra.mxu0 %v346
    %384 = vmatprep.subr.bf16.mxu0 0
    %385 = vmatpush2.bf16.msra.mxu0 %v345
    %386 = vmatprep.subr.bf16.mxu0 0
    %387 = vmatpush2.bf16.msra.mxu0 %v344
    %388 = vmatprep.subr.bf16.mxu0 0
    %389 = vmatpush2.bf16.msra.mxu0 %v343
    %390 = vmatprep.subr.bf16.mxu0 0
    %391 = vmatpush2.bf16.msra.mxu0 %v342
    %392 = vmatprep.subr.bf16.mxu0 0
    %393 = vmatpush2.bf16.msra.mxu0 %v341
    %394 = vmatprep.subr.bf16.mxu0 0
    %395 = vmatpush2.bf16.msra.mxu0 %v340
    %396 = vmatprep.mubr.bf16.mxu0 %v228
    %397 = vmatmul.mubr.bf16.gmra.mxu0 %v227
    %v398 = vpop.f32.mrf.mxu0
    %v399 = vadd.f32 %v266, %v398
    %v400 = vpop.f32.mrf.mxu0
    %v401 = vpop.f32.mrf.mxu0
    %v402 = vadd.f32 %v266, %v401
    %v403 = vpop.f32.mrf.mxu0
    %404 = vdwg.mxu0
    %v405 = vadd.f32 %v399, %v69
    %v406 = vadd.f32 %v402, %v70
    %407 = vadd.xlane.f32.xlu0 %v405
    %v408 = vpop.xlane.xlu0 %407
    %409 = vadd.xlane.f32.xlu0 %v406
    %v410 = vpop.xlane.xlu0 %409
    %v411 = vrcp.pop 128.0
    %v412 = vmul.f32 %v408, %v411
    %v413 = vmul.f32 %v410, %v411
    %v414 = vmul.f32 %v405, %v405
    %v415 = vmul.f32 %v406, %v406
    %416 = vadd.xlane.f32.xlu0 %v414
    %v417 = vpop.xlane.xlu0 %416
    %418 = vadd.xlane.f32.xlu0 %v415
    %v419 = vpop.xlane.xlu0 %418
    %v420 = vmul.f32 %v417, %v411
    %v421 = vmul.f32 %v419, %v411
    %v422 = vmul.f32 %v412, %v412
    %v423 = vmul.f32 %v413, %v413
    %v424 = vsub.f32 %v420, %v422
    %v425 = vsub.f32 %v421, %v423
    %v426 = vmax.f32 %v424, 0.0
    %v427 = vmax.f32 %v425, 0.0
    %v428 = vsub.f32 %v405, %v412
    %v429 = vsub.f32 %v406, %v413
    %v430 = vadd.f32 %v426, 1e-05
    %v431 = vadd.f32 %v427, 1e-05
    %v432 = vrsqrt.pop %v430
    %v433 = vrsqrt.pop %v431
    %v434 = vmul.f32 %v428, %v432
    %v435 = vmul.f32 %v429, %v433
    %v436 = vld [vmem:[%s5] sm:$0x1]
    %v438 = vlaneseq
    %v439 = vshrl.u32 %v438, 7
    %v440 = vsub.s32 0, %v439
    %v441 = vrot.slane %v436, %v440
    %v443 = vmul.f32 %v434, %v441
    %v444 = vmul.f32 %v435, %v441
    %v445 = vld [vmem:[%s6] sm:$0x1]
    %v447 = vlaneseq
    %v448 = vshrl.u32 %v447, 7
    %v449 = vsub.s32 0, %v448
    %v450 = vrot.slane %v445, %v449
    %v452 = vadd.f32 %v443, %v450
    %v453 = vadd.f32 %v444, %v450
    %454 = vst [vmem:[#allocation8] sm:$0xff] %v452
    %455 = vst [vmem:[#allocation8 + $0x8] sm:$0xff] %v453
    // Predicated region
    $region42: #{tpu_custom_call.1} parent=1 // pred_check
      _
    $region43: #{tpu_custom_call.1} parent=1 // pred_check_branch
      %457 = sbr.rel (0) target = $region45
    $region44: #{tpu_custom_call.1} parent=1 // pred_region
      %s459 = ssub.s32 256, 256
      %460 = vsyncadd [#allocation4], %s459
      %s461 = sshll.u32 [#allocation8], 4
      %s462 = int_to_ptr.vmem [resolvable:$true] %s461
      %467 = dma.vmem_to_hbm [thread:$0]  %s462, 256, %s7, [#allocation4], 128, 128, 8
    $region45: #{tpu_custom_call.1} parent=1 // pred_fallthru
      _
    // Predicated region
    $region46: #{tpu_custom_call.1} parent=1 // pred_check
      _
    $region47: #{tpu_custom_call.1} parent=1 // pred_check_branch
      %469 = sbr.rel (0) target = $region49
    $region48: #{tpu_custom_call.1} parent=1 // pred_region
      %470 = dma.done [#allocation4], 256
    $region49: #{tpu_custom_call.1} parent=1 // pred_fallthru
      _
    %471 = vsyncpa [#allocation3], 1
    %472 = vsyncpa [#allocation6], 1
    %473 = vsyncpa [#allocation4], 1

</llo_original>
